<compile_context>
chip_gen: v5e
topology: v5e:2x2
jax: 0.10.0
libtpu: 0.0.40
codegen_flags: <defaults>
</compile_context>

<pallas_src>
import functools

import jax
import jax.numpy as jnp
from jax import lax
from jax.experimental import pallas as pl
from jax.experimental.pallas import tpu as pltpu

_LANES = 128
_SUBLANES = 8


def _cdiv(a, b):
    return -(-a // b)


def _round_up(x, m):
    return _cdiv(x, m) * m


def _sse_partial_kernel(p_ref, t_ref, out_ref, *, groups, slab, unroll):
    """Grid = (split, L tasks, K chunks).  Per (s, l, k): fold the chunk's
    squared error into the (s, l) lane-dense (8, 128) partial-sum block.

    Steady state is VPU-only (sub/mul/vreg-aligned adds) on (slab, 128) slabs,
    so no full-block temporaries, no cross-lane XLU reduce, and no scalar
    read-modify-write -- the kernel stays a pure HBM streaming reduction.
    """
    k = pl.program_id(2)

    @pl.when(k == 0)
    def _():
        out_ref[...] = jnp.zeros_like(out_ref)

    def body(g, acc):
        base = pl.multiple_of(g * slab, slab)
        p = p_ref[pl.ds(base, slab), :].astype(jnp.float32)
        t = t_ref[pl.ds(base, slab), :].astype(jnp.float32)
        d = p - t
        sq = d * d
        # slab // 8 is a static 1 (32-bit inputs) or 2 (16-bit inputs); the
        # fold uses static, tile-aligned slices -> pure VPU adds.
        for r in range(slab // _SUBLANES):
            acc = acc + sq[r * _SUBLANES:(r + 1) * _SUBLANES, :]
        return acc

    acc = lax.fori_loop(0, groups, body,
                        jnp.zeros((_SUBLANES, _LANES), jnp.float32),
                        unroll=unroll)
    out_ref[...] += acc


def uncertainty_mse_loss(preds, targets, log_vars, *,
                         max_sub_tile=8192,
                         use_pallas=None,
                         min_pallas_elems=1 << 20):
    """Kendall-uncertainty-weighted sum of per-task MSE losses.

    preds / targets: (L, ...) task-major stacks (any trailing shape, any float
    dtype).  log_vars: (L,) parameters.  Returns scalar float32
        sum_i [ exp(-log_var_i) * MSE_i + log_var_i ].
    """
    assert preds.shape == targets.shape
    L = preds.shape[0]
    assert log_vars.shape == (L,)
    p = preds.reshape(L, -1)
    t = targets.reshape(L, -1)
    n = p.shape[1]
    log_vars = log_vars.astype(jnp.float32)

    if use_pallas is None:
        # For tiny per-task tensors the ~0.35 us/step grid overhead + launch
        # dominates; plain XLA fusion wins there.
        use_pallas = n >= min_pallas_elems

    if not use_pallas:
        d = p.astype(jnp.float32) - t.astype(jnp.float32)
        mse = jnp.sum(d * d, axis=-1) / jnp.float32(n)
        return jnp.sum(jnp.exp(-log_vars) * mse + log_vars)

    # ---- Tiling + exact zero-padding (pads contribute diff == 0 to the SSE).
    itemsize = jnp.dtype(p.dtype).itemsize
    slab = _SUBLANES * max(1, 4 // itemsize)        # 8 rows (f32) / 16 rows (bf16)
    rows = _cdiv(n, _LANES)
    split = 2 if rows >= 2 * slab else 1            # v7x megacore load-balance
    n_chunks = _round_up(max(split, _cdiv(rows, max_sub_tile)), split)
    sub_tile = _round_up(_cdiv(rows, n_chunks), slab)
    rows_pad = n_chunks * sub_tile
    n_pad = rows_pad * _LANES
    if n_pad != n:
        p = jnp.pad(p, ((0, 0), (0, n_pad - n)))
        t = jnp.pad(t, ((0, 0), (0, n_pad - n)))
    p3 = p.reshape(L, rows_pad, _LANES)
    t3 = t.reshape(L, rows_pad, _LANES)

    groups = sub_tile // slab
    k_per_split = n_chunks // split
    kernel = functools.partial(_sse_partial_kernel, groups=groups, slab=slab,
                               unroll=max(1, min(groups, 8)))

    def in_spec(buffers):
        kwargs = {} if buffers == 2 else {"pipeline_mode": pl.Buffered(buffers)}
        return pl.BlockSpec((None, sub_tile, _LANES),
                            lambda s, l, k: (l, s * k_per_split + k, 0),
                            **kwargs)

    def run(buffers):
        return pl.pallas_call(
            kernel,
            out_shape=jax.ShapeDtypeStruct((split, L, _SUBLANES, _LANES),
                                           jnp.float32),
            grid_spec=pltpu.PrefetchScalarGridSpec(
                num_scalar_prefetch=0,
                grid=(split, L, k_per_split),
                in_specs=[in_spec(buffers), in_spec(buffers)],
                # Per-(split, task) lane-dense partials, resident across the
                # chunk axis (accumulator), distinct per (s, l).
                out_specs=pl.BlockSpec((None, None, _SUBLANES, _LANES),
                                       lambda s, l, k: (s, l, 0, 0)),
            ),
            compiler_params=pltpu.CompilerParams(
                # split & task axes are independent (megacore-shardable on
                # v7x); the chunk axis carries the accumulator -> arbitrary.
                dimension_semantics=("parallel", "parallel", "arbitrary"),
                # Plenty above scoped defaults, under v7x's 64 MiB physical.
                vmem_limit_bytes=56 * 1024 * 1024,
            ),
        )(p3, t3)

    if k_per_split >= 4:
        try:
            partials = run(3)   # deeper input pipelining hides DMA issue gaps
        except Exception:       # Buffered(3) unsupported -> default 2 buffers
            partials = run(2)
    else:
        partials = run(2)

    # O(L) epilogue in plain JAX: final reduce + Kendall uncertainty weighting.
    sse = jnp.sum(partials, axis=(0, 2, 3))          # (L,), pads contribute 0
    mse = sse / jnp.float32(n)
    return jnp.sum(jnp.exp(-log_vars) * mse + log_vars)


def _reference(preds, targets, log_vars):
    """Pure-JAX reference of the PyTorch forward (MSE losses, mean reduction)."""
    L = preds.shape[0]
    p = preds.reshape(L, -1).astype(jnp.float32)
    t = targets.reshape(L, -1).astype(jnp.float32)
    mse = jnp.mean((p - t) ** 2, axis=-1)
    return jnp.sum(jnp.exp(-log_vars.astype(jnp.float32)) * mse + log_vars)


if __name__ == "__main__":
    key = jax.random.PRNGKey(0)
    k1, k2, k3, k4, k5, k6 = jax.random.split(key, 6)

    # --- Test 1: small NCHW demo matching the PyTorch module (forced kernel path).
    L, B, C, H, W = 3, 2, 4, 16, 16
    preds = jax.random.normal(k1, (L, B, C, H, W), dtype=jnp.float32)
    targets = jax.random.normal(k2, (L, B, C, H, W), dtype=jnp.float32)
    log_vars = jnp.zeros((L,), dtype=jnp.float32)  # nn.Parameter(torch.zeros(L))

    out = jax.block_until_ready(
        uncertainty_mse_loss(preds, targets, log_vars, use_pallas=True))
    ref = _reference(preds, targets, log_vars)
    assert jnp.allclose(out, ref, rtol=1e-5, atol=1e-5), (out, ref)

    # Auto-dispatch: tiny tensors take the plain-XLA path.
    out_auto = jax.block_until_ready(uncertainty_mse_loss(preds, targets, log_vars))
    assert jnp.allclose(out_auto, ref, rtol=1e-5, atol=1e-5), (out_auto, ref)

    # --- Test 2: awkward size -> exercises zero-padding (lane tail + rows),
    # the 2-way megacore split, Buffered(3) inputs and the slab fori_loop.
    L2, N2 = 3, 300000
    p2 = jax.random.normal(k3, (L2, N2), dtype=jnp.float32)
    t2 = jax.random.normal(k4, (L2, N2), dtype=jnp.float32)
    lv2 = 0.1 * jnp.arange(L2, dtype=jnp.float32)
    out2 = jax.block_until_ready(
        uncertainty_mse_loss(p2, t2, lv2, use_pallas=True, max_sub_tile=256))
    ref2 = _reference(p2, t2, lv2)
    assert jnp.allclose(out2, ref2, rtol=1e-4, atol=1e-5), (out2, ref2)

    # --- Test 3: bf16 inputs (halved HBM traffic; f32 accumulation in-kernel).
    L3, N3 = 2, 4096
    p3 = jax.random.normal(k5, (L3, N3), dtype=jnp.float32).astype(jnp.bfloat16)
    t3 = jax.random.normal(k6, (L3, N3), dtype=jnp.float32).astype(jnp.bfloat16)
    lv3 = jnp.zeros((L3,), dtype=jnp.float32)
    out3 = jax.block_until_ready(
        uncertainty_mse_loss(p3, t3, lv3, use_pallas=True))
    ref3 = _reference(p3.astype(jnp.float32), t3.astype(jnp.float32), lv3)
    assert jnp.allclose(out3, ref3, rtol=1e-5, atol=1e-5), (out3, ref3)

    print("KERNEL_OK")
</pallas_src>

<mosaic_0001>
module attributes {stable_mosaic.version = 11 : i64} {
  func.func @_sse_partial_kernel(%arg0: i32, %arg1: i32, %arg2: i32, %arg3: memref<1x8x128xf32, #tpu.memory_space<vmem>>, %arg4: memref<1x8x128xf32, #tpu.memory_space<vmem>>, %arg5: memref<1x1x8x128xf32, #tpu.memory_space<vmem>>) attributes {dimension_semantics = [#tpu.dimension_semantics<parallel>, #tpu.dimension_semantics<parallel>, #tpu.dimension_semantics<arbitrary>], iteration_bounds = array<i64: 2, 3, 1>, scalar_prefetch = 0 : i64, scratch_operands = 0 : i64, tpu.core_type = #tpu.core_type<tc>, window_params = [{transform_indices = @transform_0, window_bounds = array<i64: 1, 8, 128>}, {transform_indices = @transform_1, window_bounds = array<i64: 1, 8, 128>}, {transform_indices = @transform_2, window_bounds = array<i64: 1, 1, 8, 128>}]} {
    %c0_i32 = arith.constant 0 : i32
    %0 = arith.cmpi eq, %arg2, %c0_i32 : i32
    %1 = arith.extui %0 : i1 to i32
    %c0_i32_0 = arith.constant 0 : i32
    %2 = arith.cmpi ne, %1, %c0_i32_0 : i32
    scf.if %2 {
      %cst_13 = arith.constant 0.000000e+00 : f32
      %21 = vector.broadcast %cst_13 : f32 to vector<8x128xf32>
      %c0_14 = arith.constant 0 : index
      %c0_15 = arith.constant 0 : index
      %c0_16 = arith.constant 0 : index
      %c0_17 = arith.constant 0 : index
      %22 = vector.load %arg5[%c0_14, %c0_15, %c0_16, %c0_17] : memref<1x1x8x128xf32, #tpu.memory_space<vmem>>, vector<1x1x8x128xf32>
      %23 = vector.shape_cast %22 : vector<1x1x8x128xf32> to vector<8x128xf32>
      %24 = vector.shape_cast %21 : vector<8x128xf32> to vector<1x1x8x128xf32>
      tpu.vector_store %arg5[%c0_14, %c0_15, %c0_16, %c0_17], %24 {strides = array<i32>} : memref<1x1x8x128xf32, #tpu.memory_space<vmem>>, vector<1x1x8x128xf32>,
    } else {
    }
    %cst = arith.constant 0.000000e+00 : f32
    %3 = vector.broadcast %cst : f32 to vector<8x128xf32>
    %c0_i32_1 = arith.constant 0 : i32
    %c8_i32 = arith.constant 8 : i32
    %4 = arith.muli %c0_i32_1, %c8_i32 : i32
    %5 = tpu.assume_multiple %4, 8 : i32
    %c0 = arith.constant 0 : index
    %6 = arith.index_cast %5 : i32 to index
    %c0_2 = arith.constant 0 : index
    %7 = vector.load %arg3[%c0, %6, %c0_2] : memref<1x8x128xf32, #tpu.memory_space<vmem>>, vector<1x8x128xf32>
    %8 = vector.shape_cast %7 : vector<1x8x128xf32> to vector<8x128xf32>
    %c0_3 = arith.constant 0 : index
    %9 = arith.index_cast %5 : i32 to index
    %c0_4 = arith.constant 0 : index
    %10 = vector.load %arg4[%c0_3, %9, %c0_4] : memref<1x8x128xf32, #tpu.memory_space<vmem>>, vector<1x8x128xf32>
    %11 = vector.shape_cast %10 : vector<1x8x128xf32> to vector<8x128xf32>
    %12 = arith.subf %8, %11 : vector<8x128xf32>
    %13 = arith.mulf %12, %12 : vector<8x128xf32>
    %14 = arith.addf %3, %13 : vector<8x128xf32>
    %c1_i32 = arith.constant 1 : i32
    %c0_5 = arith.constant 0 : index
    %c0_6 = arith.constant 0 : index
    %c0_7 = arith.constant 0 : index
    %c0_8 = arith.constant 0 : index
    %15 = vector.load %arg5[%c0_5, %c0_6, %c0_7, %c0_8] : memref<1x1x8x128xf32, #tpu.memory_space<vmem>>, vector<1x1x8x128xf32>
    %16 = vector.shape_cast %15 : vector<1x1x8x128xf32> to vector<8x128xf32>
    %17 = arith.addf %16, %14 : vector<8x128xf32>
    %c0_9 = arith.constant 0 : index
    %c0_10 = arith.constant 0 : index
    %c0_11 = arith.constant 0 : index
    %c0_12 = arith.constant 0 : index
    %18 = vector.load %arg5[%c0_9, %c0_10, %c0_11, %c0_12] : memref<1x1x8x128xf32, #tpu.memory_space<vmem>>, vector<1x1x8x128xf32>
    %19 = vector.shape_cast %18 : vector<1x1x8x128xf32> to vector<8x128xf32>
    %20 = vector.shape_cast %17 : vector<8x128xf32> to vector<1x1x8x128xf32>
    tpu.vector_store %arg5[%c0_9, %c0_10, %c0_11, %c0_12], %20 {strides = array<i32>} : memref<1x1x8x128xf32, #tpu.memory_space<vmem>>, vector<1x1x8x128xf32>,
    return
  }
  func.func @transform_0(%arg0: i32, %arg1: i32, %arg2: i32) -> (i32, i32, i32) {
    %c1_i32 = arith.constant 1 : i32
    %0 = arith.muli %arg0, %c1_i32 : i32
    %1 = arith.addi %0, %arg2 : i32
    %c0_i32 = arith.constant 0 : i32
    %c0_i32_0 = arith.constant 0 : i32
    return %arg1, %1, %c0_i32 : i32, i32, i32
  }
  func.func @transform_1(%arg0: i32, %arg1: i32, %arg2: i32) -> (i32, i32, i32) {
    %c1_i32 = arith.constant 1 : i32
    %0 = arith.muli %arg0, %c1_i32 : i32
    %1 = arith.addi %0, %arg2 : i32
    %c0_i32 = arith.constant 0 : i32
    %c0_i32_0 = arith.constant 0 : i32
    return %arg1, %1, %c0_i32 : i32, i32, i32
  }
  func.func @transform_2(%arg0: i32, %arg1: i32, %arg2: i32) -> (i32, i32, i32, i32) {
    %c0_i32 = arith.constant 0 : i32
    %c0_i32_0 = arith.constant 0 : i32
    %c0_i32_1 = arith.constant 0 : i32
    return %arg0, %arg1, %c0_i32, %c0_i32_0 : i32, i32, i32, i32
  }
}

</mosaic_0001>

<llo_original>
// kernel: tpu_custom_call.1
$region0: #{tpu_custom_call.1}
  #allocation0 [shape = 'u32[]', space=smem, size = 0x4, offset = 0x4, fixed_abs, tag = 'smem constant byte address 0x4 - core index']
  #allocation1 [shape = 'u32[72,128]{1,0:T(1,128)}', space=vmem, size = 0x9000, scoped, tag = 'internal scratch']
  %s0 = inlined_call_operand.hbm [shape: f32[3,16,128], index: 0, kind: input, shape index: {}]
  %s1 = inlined_call_operand.hbm [shape: f32[3,16,128], index: 1, kind: input, shape index: {}]
  %s2 = inlined_call_operand.hbm [shape: f32[2,3,8,128], index: 2, kind: output, shape index: {}]
  %s3 = sld [smem:[#allocation0]]
  $region53: #{tpu_custom_call.1} parent=0
    _
  %s5 = ssub.s32 1, %s3
  %s6 = scalar_select 0, %s5, %s3
  $region1: #{tpu_custom_call.1} parent=0
    #allocation2 [shape = 'u8[8192]{0}', space=vmem, size = 0x2000, scoped, tag = 'input window, operand 0']
    #allocation3 [shape = 's32[2]{0}', space=sflag, size = 0x8, scoped, tag = 'scoped memory for tpu_custom_call.1']
    #allocation4 [shape = 's32[2]{0}', space=sflag, size = 0x8, scoped, tag = 'scoped memory for tpu_custom_call.1']
    #allocation5 [shape = 'u8[8192]{0}', space=vmem, size = 0x2000, scoped, tag = 'input window, operand 1']
    #allocation6 [shape = 's32[2]{0}', space=sflag, size = 0x8, scoped, tag = 'scoped memory for tpu_custom_call.1']
    #allocation7 [shape = 'u8[8192]{0}', space=vmem, size = 0x2000, scoped, tag = 'output window, operand 0']
    %7 = vsyncpa [#allocation3], 0
    %s8 = scalar_lea.sflag [#allocation3], 1
    %9 = vsyncpa %s8, 0
    %10 = vsyncpa [#allocation6], 0
    %s11 = scalar_lea.sflag [#allocation6], 1
    %12 = vsyncpa %s11, 0
    %13 = vsyncpa [#allocation4], 0
    %s14 = scalar_lea.sflag [#allocation4], 1
    %15 = vsyncpa %s14, 0
    loop: start=0, step=1, limit=8
    $region2: #{tpu_custom_call.1} parent=1 // loop_pre_header
      _
    $region3: #{tpu_custom_call.1} parent=1 // loop_header
      %s17 = sphi 0, %s21
      %p18 = scmp.ge.s32.totalorder %s17, 8
      %s24 = sphi 0, %s43
      %s25 = sphi 0, %s39
      %s26 = sphi 0, %s35
      %s27 = sphi 0, %s24
      %s28 = sphi 0, %s25
      %s29 = sphi 0, %s26
      %s30 = sphi 0, %s27
      %s31 = sphi 0, %s28
      %s32 = sphi 0, %s29
      %s50 = sphi 0, %s52
      %s53 = sphi 0, %s50
      %s54 = sphi 0, %s53
      %s70 = sphi 0, %s54
      %s80 = sphi 0, %s82
      %s83 = sphi 0, %s80
      %s84 = sphi 0, %s83
      %s100 = sphi 0, %s84
      %s108 = sphi 0, %s110
      %s111 = sphi 0, %s108
      %s112 = sphi 0, %s111
      %s128 = sphi 0, %s112
    $region4: #{tpu_custom_call.1} parent=1 // loop_header_branch
      %20 = sbr.rel (%p18) target = $region8
    $region5: #{tpu_custom_call.1} parent=1 // loop_body
      %s22 = ssub.s32 %s17, 1
      %s23 = ssub.s32 %s17, 2
      %s33 = sadd.s32 1, %s26
      %p34 = scmp.ge.s32.totalorder %s33, 1
      %s35 = scalar_select %p34, 0, %s33
      %s36 = sadd.s32 1, %s25
      %s37 = scalar_select %p34, %s36, %s25
      %p38 = scmp.ge.s32.totalorder %s37, 3
      %s39 = scalar_select %p38, 0, %s37
      %s40 = sadd.s32 1, %s24
      %s41 = scalar_select %p38, %s40, %s24
      %p42 = scmp.ge.s32.totalorder %s41, 2
      %s43 = scalar_select %p42, 0, %s41
      %s44 = sadd.s32 %s24, %s26
      %s45 = sadd.s32 %s43, %s35
      %s46 = ssub.s32 %s25, %s39
      %s47 = ssub.s32 %s44, %s45
      %s48 = sor.u32 %s46, %s47
      %p49 = scmp.eq.s32.totalorder %s48, 0
      %s51 = sadd.s32 %s50, 1
      %s52 = scalar_select %p49, %s50, %s51
      %p55 = pneg %p49
      %p56 = scmp.eq.s32.totalorder %s17, 5
      %p57 = por %p55, %p56
      %p58 = scmp.ne.s32.totalorder %s50, %s53
      %p59 = scmp.eq.s32.totalorder %s17, 0
      %p60 = por %p58, %p59
      %p61 = scmp.ne.s32.totalorder %s50, %s53
      %p62 = scmp.eq.s32.totalorder %s22, 5
      %p63 = por %p61, %p62
      %p64 = scmp.ne.s32.totalorder %s53, %s54
      %p65 = scmp.eq.s32.totalorder %s22, 0
      %p66 = por %p64, %p65
      %p67 = scmp.ne.s32.totalorder %s53, %s54
      %p68 = scmp.eq.s32.totalorder %s23, 5
      %p69 = por %p67, %p68
      %p71 = scmp.ne.s32.totalorder %s54, %s70
      %p72 = scmp.eq.s32.totalorder %s23, 0
      %p73 = por %p71, %p72
      %s74 = sadd.s32 %s24, %s26
      %s75 = sadd.s32 %s43, %s35
      %s76 = ssub.s32 %s25, %s39
      %s77 = ssub.s32 %s74, %s75
      %s78 = sor.u32 %s76, %s77
      %p79 = scmp.eq.s32.totalorder %s78, 0
      %s81 = sadd.s32 %s80, 1
      %s82 = scalar_select %p79, %s80, %s81
      %p85 = pneg %p79
      %p86 = scmp.eq.s32.totalorder %s17, 5
      %p87 = por %p85, %p86
      %p88 = scmp.ne.s32.totalorder %s80, %s83
      %p89 = scmp.eq.s32.totalorder %s17, 0
      %p90 = por %p88, %p89
      %p91 = scmp.ne.s32.totalorder %s80, %s83
      %p92 = scmp.eq.s32.totalorder %s22, 5
      %p93 = por %p91, %p92
      %p94 = scmp.ne.s32.totalorder %s83, %s84
      %p95 = scmp.eq.s32.totalorder %s22, 0
      %p96 = por %p94, %p95
      %p97 = scmp.ne.s32.totalorder %s83, %s84
      %p98 = scmp.eq.s32.totalorder %s23, 5
      %p99 = por %p97, %p98
      %p101 = scmp.ne.s32.totalorder %s84, %s100
      %p102 = scmp.eq.s32.totalorder %s23, 0
      %p103 = por %p101, %p102
      %s104 = ssub.s32 %s24, %s43
      %s105 = ssub.s32 %s25, %s39
      %s106 = sor.u32 %s104, %s105
      %p107 = scmp.eq.s32.totalorder %s106, 0
      %s109 = sadd.s32 %s108, 1
      %s110 = scalar_select %p107, %s108, %s109
      %p113 = pneg %p107
      %p114 = scmp.eq.s32.totalorder %s17, 5
      %p115 = por %p113, %p114
      %p116 = scmp.ne.s32.totalorder %s108, %s111
      %p117 = scmp.eq.s32.totalorder %s17, 0
      %p118 = por %p116, %p117
      %p119 = scmp.ne.s32.totalorder %s108, %s111
      %p120 = scmp.eq.s32.totalorder %s22, 5
      %p121 = por %p119, %p120
      %p122 = scmp.ne.s32.totalorder %s111, %s112
      %p123 = scmp.eq.s32.totalorder %s22, 0
      %p124 = por %p122, %p123
      %p125 = scmp.ne.s32.totalorder %s111, %s112
      %p126 = scmp.eq.s32.totalorder %s23, 5
      %p127 = por %p125, %p126
      %p129 = scmp.ne.s32.totalorder %s112, %s128
      %p130 = scmp.eq.s32.totalorder %s23, 0
      %p131 = por %p129, %p130
      %p132 = scmp.le.s32.totalorder 1, %s17
      %p133 = scmp.lt.s32.totalorder %s17, 7
      %p134 = pnand %p132, %p133
      %p135 = pneg %p134
      // Predicated region
      $region9: #{tpu_custom_call.1} parent=5 // pred_check
        _
      $region10: #{tpu_custom_call.1} parent=5 // pred_check_branch
        %137 = sbr.rel (%p134) target = $region12
      $region11: #{tpu_custom_call.1} parent=5 // pred_region
        %s138 = ssub.s32 %s17, 1
      $region12: #{tpu_custom_call.1} parent=5 // pred_fallthru
        _
      %p139 = scmp.lt.s32.totalorder %s17, 6
      // Predicated region
      $region13: #{tpu_custom_call.1} parent=5 // pred_check
        %p140 = pneg %p139
      $region14: #{tpu_custom_call.1} parent=5 // pred_check_branch
        %142 = sbr.rel (%p140) target = $region16
      $region15: #{tpu_custom_call.1} parent=5 // pred_region
        // Predicated region
        $region17: #{tpu_custom_call.1} parent=15 // pred_check
          %p143 = pneg %p60
        $region18: #{tpu_custom_call.1} parent=15 // pred_check_branch
          %145 = sbr.rel (%p143) target = $region20
        $region19: #{tpu_custom_call.1} parent=15 // pred_region
          %s146 = sand.u32 %s50, 1
          %s147 = scalar_lea.sflag [#allocation3], %s146
          %s148 = sand.u32 %s50, 1
          %s149 = smul.addr %s148, 8
          %s150 = scalar_lea.vmem [#allocation2], %s149
          %s151 = sadd.s32 %s24, %s26
          %153 = vsyncadd %s147, 0
          %s154 = smul.addr %s25, 2
          %s155 = sadd.s32 %s151, %s154
          %s156 = smul.addr %s155, 8
          %s157 = scalar_lea.hbm %s0, %s156
          %s159 = sshll.u32 %s157, 4
          %s160 = int_to_ptr.hbm [resolvable:$true] %s159
          %s161 = sshll.u32 %s150, 4
          %s162 = int_to_ptr.vmem [resolvable:$true] %s161
          %164 = dma.hbm_to_vmem [thread:$0]  %s160, 128, %s162, %s147
        $region20: #{tpu_custom_call.1} parent=15 // pred_fallthru
          _
        // Predicated region
        $region21: #{tpu_custom_call.1} parent=15 // pred_check
          %p165 = pneg %p90
        $region22: #{tpu_custom_call.1} parent=15 // pred_check_branch
          %167 = sbr.rel (%p165) target = $region24
        $region23: #{tpu_custom_call.1} parent=15 // pred_region
          %s168 = sand.u32 %s80, 1
          %s169 = scalar_lea.sflag [#allocation6], %s168
          %s170 = sand.u32 %s80, 1
          %s171 = smul.addr %s170, 8
          %s172 = scalar_lea.vmem [#allocation5], %s171
          %s173 = sadd.s32 %s24, %s26
          %175 = vsyncadd %s169, 0
          %s176 = smul.addr %s25, 2
          %s177 = sadd.s32 %s173, %s176
          %s178 = smul.addr %s177, 8
          %s179 = scalar_lea.hbm %s1, %s178
          %s181 = sshll.u32 %s179, 4
          %s182 = int_to_ptr.hbm [resolvable:$true] %s181
          %s183 = sshll.u32 %s172, 4
          %s184 = int_to_ptr.vmem [resolvable:$true] %s183
          %186 = dma.hbm_to_vmem [thread:$0]  %s182, 128, %s184, %s169
        $region24: #{tpu_custom_call.1} parent=15 // pred_fallthru
          _
      $region16: #{tpu_custom_call.1} parent=5 // pred_fallthru
        _
      %p187 = scmp.le.s32.totalorder 1, %s17
      %p188 = scmp.lt.s32.totalorder %s17, 7
      %p189 = pnand %p187, %p188
      %p190 = pneg %p189
      // Predicated region
      $region25: #{tpu_custom_call.1} parent=5 // pred_check
        _
      $region26: #{tpu_custom_call.1} parent=5 // pred_check_branch
        %192 = sbr.rel (%p189) target = $region28
      $region27: #{tpu_custom_call.1} parent=5 // pred_region
        %s193 = ssub.s32 %s17, 1
        %s194 = sand.u32 %s53, 1
        %s195 = scalar_lea.sflag [#allocation3], %s194
        %s196 = sand.u32 %s53, 1
        %s197 = smul.addr %s196, 8
        %s198 = scalar_lea.vmem [#allocation2], %s197
        // Predicated region
        $region29: #{tpu_custom_call.1} parent=27 // pred_check
          %p199 = pneg %p66
        $region30: #{tpu_custom_call.1} parent=27 // pred_check_branch
          %201 = sbr.rel (%p199) target = $region32
        $region31: #{tpu_custom_call.1} parent=27 // pred_region
          %203 = dma.done %s195, 128
        $region32: #{tpu_custom_call.1} parent=27 // pred_fallthru
          _
        %s204 = sand.u32 %s83, 1
        %s205 = scalar_lea.sflag [#allocation6], %s204
        %s206 = sand.u32 %s83, 1
        %s207 = smul.addr %s206, 8
        %s208 = scalar_lea.vmem [#allocation5], %s207
        // Predicated region
        $region33: #{tpu_custom_call.1} parent=27 // pred_check
          %p209 = pneg %p96
        $region34: #{tpu_custom_call.1} parent=27 // pred_check_branch
          %211 = sbr.rel (%p209) target = $region36
        $region35: #{tpu_custom_call.1} parent=27 // pred_region
          %213 = dma.done %s205, 128
        $region36: #{tpu_custom_call.1} parent=27 // pred_fallthru
          _
        %s214 = sand.u32 %s53, 1
        %s215 = scalar_lea.sflag [#allocation3], %s214
        %s216 = sand.u32 %s53, 1
        %s217 = smul.addr %s216, 8
        %s218 = scalar_lea.vmem [#allocation2], %s217
        %p219 = pneg %p66
        %p220 = pneg %p63
        %s221 = sand.u32 %s83, 1
        %s222 = scalar_lea.sflag [#allocation6], %s221
        %s223 = sand.u32 %s83, 1
        %s224 = smul.addr %s223, 8
        %s225 = scalar_lea.vmem [#allocation5], %s224
        %p226 = pneg %p96
        %p227 = pneg %p93
        %p228 = pneg %p124
        %p229 = pneg %p121
        %s230 = sand.u32 %s111, 1
        %s231 = scalar_lea.sflag [#allocation4], %s230
        %s232 = sand.u32 %s111, 1
        %s233 = smul.addr %s232, 8
        %s234 = scalar_lea.vmem [#allocation7], %s233
        %s235 = sadd.s32 %s27, %s29
        %s236 = sadd.s32 %s27, %s29
        %p237 = scmp.eq.s32.totalorder %s29, 0
        // Predicated region
        $region37: #{tpu_custom_call.1} parent=27 // pred_check
          %p238 = pneg %p237
        $region38: #{tpu_custom_call.1} parent=27 // pred_check_branch
          %240 = sbr.rel (%p238) target = $region40
        $region39: #{tpu_custom_call.1} parent=27 // pred_region
          %241 = vst [vmem:[%s234] sm:$0xff] 0.0
        $region40: #{tpu_custom_call.1} parent=27 // pred_fallthru
          _
        %v242 = vld [vmem:[%s198] sm:$0xff]
        %v243 = vld [vmem:[%s208] sm:$0xff]
        %v244 = vsub.f32 %v242, %v243
        %v245 = vmul.f32 %v244, %v244
        %v246 = vadd.f32 %v245, 0.0
        %v247 = vld [vmem:[%s234] sm:$0xff]
        %v248 = vadd.f32 %v247, %v246
        %249 = vst [vmem:[%s234] sm:$0xff] %v248
        %s250 = sand.u32 %s111, 1
        %s251 = scalar_lea.sflag [#allocation4], %s250
        %s252 = sand.u32 %s111, 1
        %s253 = smul.addr %s252, 8
        %s254 = scalar_lea.vmem [#allocation7], %s253
        // Predicated region
        $region41: #{tpu_custom_call.1} parent=27 // pred_check
          %p255 = pneg %p121
        $region42: #{tpu_custom_call.1} parent=27 // pred_check_branch
          %257 = sbr.rel (%p255) target = $region44
        $region43: #{tpu_custom_call.1} parent=27 // pred_region
          %259 = vsyncadd %s251, 0
          %s260 = smul.addr %s27, 3
          %s261 = sadd.s32 %s28, %s260
          %s262 = smul.addr %s261, 8
          %s263 = scalar_lea.hbm %s2, %s262
          %s265 = sshll.u32 %s254, 4
          %s266 = int_to_ptr.vmem [resolvable:$true] %s265
          %s267 = sshll.u32 %s263, 4
          %s268 = int_to_ptr.hbm [resolvable:$true] %s267
          %270 = dma.vmem_to_hbm [thread:$0]  %s266, 128, %s268, %s251
        $region44: #{tpu_custom_call.1} parent=27 // pred_fallthru
          _
      $region28: #{tpu_custom_call.1} parent=5 // pred_fallthru
        _
      %p271 = scmp.le.s32.totalorder 2, %s17
      // Predicated region
      $region45: #{tpu_custom_call.1} parent=5 // pred_check
        %p272 = pneg %p271
      $region46: #{tpu_custom_call.1} parent=5 // pred_check_branch
        %274 = sbr.rel (%p272) target = $region48
      $region47: #{tpu_custom_call.1} parent=5 // pred_region
        %s275 = ssub.s32 %s17, 2
        // Predicated region
        $region49: #{tpu_custom_call.1} parent=47 // pred_check
          %p276 = pneg %p127
        $region50: #{tpu_custom_call.1} parent=47 // pred_check_branch
          %278 = sbr.rel (%p276) target = $region52
        $region51: #{tpu_custom_call.1} parent=47 // pred_region
          %s279 = sand.u32 %s112, 1
          %s280 = scalar_lea.sflag [#allocation4], %s279
          %s281 = sand.u32 %s112, 1
          %s282 = smul.addr %s281, 8
          %s283 = scalar_lea.vmem [#allocation7], %s282
          %285 = dma.done %s280, 128
        $region52: #{tpu_custom_call.1} parent=47 // pred_fallthru
          _
      $region48: #{tpu_custom_call.1} parent=5 // pred_fallthru
        _
    $region6: #{tpu_custom_call.1} parent=1 // loop_footer
      %s21 = sadd.s32 1, %s17
    $region7: #{tpu_custom_call.1} parent=1 // loop_footer_branch
      %16 = sbr.rel target = $region3
    $region8: #{tpu_custom_call.1} parent=1 // loop_exit
      _
    %286 = vsyncpa [#allocation3], 1
    %s287 = scalar_lea.sflag [#allocation3], 1
    %288 = vsyncpa %s287, 1
    %289 = vsyncpa [#allocation6], 1
    %s290 = scalar_lea.sflag [#allocation6], 1
    %291 = vsyncpa %s290, 1
    %292 = vsyncpa [#allocation4], 1
    %s293 = scalar_lea.sflag [#allocation4], 1
    %294 = vsyncpa %s293, 1

</llo_original>
